<compile_context>
chip_gen: v7x
topology: tpu7x:2x2x1
jax: 0.10.0
libtpu: 0.0.40
codegen_flags: <defaults>
</compile_context>

<pallas_src>
import jax
import jax.numpy as jnp
from jax.experimental import pallas as pl
from jax.experimental.pallas import tpu as pltpu

HIDDEN_SIZE_1 = 32
HIDDEN_SIZE_2 = 16
N_u_model = 2
N_y_model = 1
INPUT_FEATURES_MODEL = N_u_model + N_y_model  # 3
OUTPUT_SIZE = 1

TILE_B = 4096  # batch lanes per grid step (multiple of 128); amortizes per-step overhead


def _round_up(n, m):
    return ((n + m - 1) // m) * m


def _mlp_kernel(x_ref, w1_ref, b1_ref, w2_ref, b2_ref, w3_ref, b3_ref, o_ref):
    """One batch tile, batch along the lane axis.

    x_ref : (3, TB)     w1_ref: (32, 3)   b1_ref: (32, 1)
    w2_ref: (16, 32)    b2_ref: (16, 1)
    w3_ref: (16, 1)     b3_ref: (1, 1)
    o_ref : (1, TB)
    """
    x = x_ref[...]
    w1 = w1_ref[...]

    # fc1 (K=3): three broadcast FMAs on the VPU instead of a degenerate MXU pass.
    h1 = (w1[:, 0:1] * x[0:1, :]
          + w1[:, 1:2] * x[1:2, :]
          + w1[:, 2:3] * x[2:3, :]
          + b1_ref[...])                                    # (32, TB)
    h1 = jnp.maximum(h1, 0.0)

    # fc2 (32 -> 16): the only real contraction -> MXU, f32 accumulate.
    h2 = jnp.dot(w2_ref[...], h1, preferred_element_type=jnp.float32) + b2_ref[...]
    h2 = jnp.maximum(h2, 0.0)                               # (16, TB)

    # fc_out (16 -> 1): elementwise mul + sublane reduction (XLU), MXU-free.
    y = jnp.sum(w3_ref[...] * h2, axis=0, keepdims=True) + b3_ref[...]   # (1, TB)
    o_ref[...] = y.astype(o_ref.dtype)


def system2nn_ctrl_forward(x, params, *, tile_b=TILE_B):
    """x: (B, 3) float32 -> (B, 1) float32; same math as the PyTorch module."""
    B = x.shape[0]
    w1, b1 = params["w1"], params["b1"]
    w2, b2 = params["w2"], params["b2"]
    w3, b3 = params["w3"], params["b3"]

    # Lane-aligned batch tile; pad B so the grid divides evenly (tail handled by padding).
    tb = min(tile_b, _round_up(max(B, 1), 128))
    b_pad = _round_up(B, tb)
    grid = (b_pad // tb,)

    # Wrapper-side layout plumbing: batch goes onto lanes.
    x_t = jnp.pad(x.astype(jnp.float32), ((0, b_pad - B), (0, 0))).T     # (3, b_pad)

    # Weights/biases: full-extent blocks with constant index maps -> VMEM-resident.
    resident = lambda a: pl.BlockSpec(a.shape, lambda i: (0, 0))

    weight_bytes = sum(int(a.size) * 4 for a in (w1, b1, w2, b2, w3, b3))
    cost = pl.CostEstimate(
        flops=2 * b_pad * (INPUT_FEATURES_MODEL * HIDDEN_SIZE_1
                           + HIDDEN_SIZE_1 * HIDDEN_SIZE_2
                           + HIDDEN_SIZE_2 * OUTPUT_SIZE),
        transcendentals=0,
        bytes_accessed=b_pad * (INPUT_FEATURES_MODEL + OUTPUT_SIZE) * 4 + weight_bytes,
    )

    y_t = pl.pallas_call(
        _mlp_kernel,
        out_shape=jax.ShapeDtypeStruct((OUTPUT_SIZE, b_pad), jnp.float32),
        grid_spec=pltpu.PrefetchScalarGridSpec(
            num_scalar_prefetch=0,
            grid=grid,
            in_specs=[
                pl.BlockSpec((INPUT_FEATURES_MODEL, tb), lambda i: (0, i)),
                resident(w1), resident(b1),
                resident(w2), resident(b2),
                resident(w3), resident(b3),
            ],
            out_specs=pl.BlockSpec((OUTPUT_SIZE, tb), lambda i: (0, i)),
        ),
        compiler_params=pltpu.CompilerParams(
            dimension_semantics=("parallel",),   # megacore sharding on v7x; harmless elsewhere
            vmem_limit_bytes=32 * 1024 * 1024,
        ),
        cost_estimate=cost,
    )(x_t, w1, b1, w2, b2, w3, b3)

    return y_t.T[:B]                                         # (B, 1)


def init_params(key):
    """PyTorch nn.Linear default init (uniform +/- 1/sqrt(fan_in)).
    w1/w2 stored in torch (out, in) layout; w3 stored as (in, out)=(16,1) for the
    in-kernel mul+reduce; biases stored as (out, 1) columns."""
    layers = [(INPUT_FEATURES_MODEL, HIDDEN_SIZE_1),
              (HIDDEN_SIZE_1, HIDDEN_SIZE_2),
              (HIDDEN_SIZE_2, OUTPUT_SIZE)]
    params = {}
    for i, (fan_in, fan_out) in enumerate(layers, start=1):
        key, kw, kb = jax.random.split(key, 3)
        bound = float(1.0 / (fan_in ** 0.5))
        w = jax.random.uniform(kw, (fan_out, fan_in), jnp.float32, -bound, bound)
        b = jax.random.uniform(kb, (fan_out, 1), jnp.float32, -bound, bound)
        if i == 3:
            w = w.T                                           # (16, 1)
        params[f"w{i}"] = w
        params[f"b{i}"] = b
    return params


def reference_forward(x, params):
    h1 = jnp.maximum(x @ params["w1"].T + params["b1"].T, 0.0)
    h2 = jnp.maximum(h1 @ params["w2"].T + params["b2"].T, 0.0)
    return h2 @ params["w3"] + params["b3"].T


if __name__ == "__main__":
    key = jax.random.PRNGKey(0)
    key, kx = jax.random.split(key)
    batch = 8
    x = jax.random.normal(kx, (batch, INPUT_FEATURES_MODEL), jnp.float32)
    params = init_params(key)

    out = jax.block_until_ready(system2nn_ctrl_forward(x, params))
    ref = reference_forward(x, params)

    assert out.shape == (batch, OUTPUT_SIZE), out.shape
    assert jnp.allclose(out, ref, atol=1e-5, rtol=1e-5)
    print("KERNEL_OK")
</pallas_src>

<mosaic_0001>
module attributes {stable_mosaic.version = 11 : i64} {
  func.func @_mlp_kernel(%arg0: i32, %arg1: memref<3x128xf32, #tpu.memory_space<vmem>>, %arg2: memref<32x3xf32, #tpu.memory_space<vmem>>, %arg3: memref<32x1xf32, #tpu.memory_space<vmem>>, %arg4: memref<16x32xf32, #tpu.memory_space<vmem>>, %arg5: memref<16x1xf32, #tpu.memory_space<vmem>>, %arg6: memref<16x1xf32, #tpu.memory_space<vmem>>, %arg7: memref<1x1xf32, #tpu.memory_space<vmem>>, %arg8: memref<1x128xf32, #tpu.memory_space<vmem>>) attributes {dimension_semantics = [#tpu.dimension_semantics<parallel>], iteration_bounds = array<i64: 1>, scalar_prefetch = 0 : i64, scratch_operands = 0 : i64, tpu.core_type = #tpu.core_type<tc>, window_params = [{transform_indices = @transform_0, window_bounds = array<i64: 3, 128>}, {pipeline_mode = #tpu.pipeline_mode<synchronous>, transform_indices = @transform_1, window_bounds = array<i64: 32, 3>}, {pipeline_mode = #tpu.pipeline_mode<synchronous>, transform_indices = @transform_2, window_bounds = array<i64: 32, 1>}, {pipeline_mode = #tpu.pipeline_mode<synchronous>, transform_indices = @transform_3, window_bounds = array<i64: 16, 32>}, {pipeline_mode = #tpu.pipeline_mode<synchronous>, transform_indices = @transform_4, window_bounds = array<i64: 16, 1>}, {pipeline_mode = #tpu.pipeline_mode<synchronous>, transform_indices = @transform_5, window_bounds = array<i64: 16, 1>}, {pipeline_mode = #tpu.pipeline_mode<synchronous>, transform_indices = @transform_6, window_bounds = array<i64: 1, 1>}, {transform_indices = @transform_7, window_bounds = array<i64: 1, 128>}]} {
    %c0 = arith.constant 0 : index
    %c0_0 = arith.constant 0 : index
    %0 = vector.load %arg1[%c0, %c0_0] : memref<3x128xf32, #tpu.memory_space<vmem>>, vector<3x128xf32>
    %c0_1 = arith.constant 0 : index
    %c0_2 = arith.constant 0 : index
    %1 = vector.load %arg2[%c0_1, %c0_2] : memref<32x3xf32, #tpu.memory_space<vmem>>, vector<32x3xf32>
    %2 = vector.extract_strided_slice %1 {offsets = [0, 0], sizes = [32, 1], strides = [1, 1]} : vector<32x3xf32> to vector<32x1xf32>
    %3 = vector.extract_strided_slice %0 {offsets = [0, 0], sizes = [1, 128], strides = [1, 1]} : vector<3x128xf32> to vector<1x128xf32>
    %4 = vector.broadcast %2 : vector<32x1xf32> to vector<32x128xf32>
    %5 = vector.broadcast %3 : vector<1x128xf32> to vector<32x128xf32>
    %6 = arith.mulf %4, %5 : vector<32x128xf32>
    %7 = vector.extract_strided_slice %1 {offsets = [0, 1], sizes = [32, 1], strides = [1, 1]} : vector<32x3xf32> to vector<32x1xf32>
    %8 = vector.extract_strided_slice %0 {offsets = [1, 0], sizes = [1, 128], strides = [1, 1]} : vector<3x128xf32> to vector<1x128xf32>
    %9 = vector.broadcast %7 : vector<32x1xf32> to vector<32x128xf32>
    %10 = vector.broadcast %8 : vector<1x128xf32> to vector<32x128xf32>
    %11 = arith.mulf %9, %10 : vector<32x128xf32>
    %12 = arith.addf %6, %11 : vector<32x128xf32>
    %13 = vector.extract_strided_slice %1 {offsets = [0, 2], sizes = [32, 1], strides = [1, 1]} : vector<32x3xf32> to vector<32x1xf32>
    %14 = vector.extract_strided_slice %0 {offsets = [2, 0], sizes = [1, 128], strides = [1, 1]} : vector<3x128xf32> to vector<1x128xf32>
    %15 = vector.broadcast %13 : vector<32x1xf32> to vector<32x128xf32>
    %16 = vector.broadcast %14 : vector<1x128xf32> to vector<32x128xf32>
    %17 = arith.mulf %15, %16 : vector<32x128xf32>
    %18 = arith.addf %12, %17 : vector<32x128xf32>
    %c0_3 = arith.constant 0 : index
    %c0_4 = arith.constant 0 : index
    %19 = vector.load %arg3[%c0_3, %c0_4] : memref<32x1xf32, #tpu.memory_space<vmem>>, vector<32x1xf32>
    %20 = vector.broadcast %19 : vector<32x1xf32> to vector<32x128xf32>
    %21 = arith.addf %18, %20 : vector<32x128xf32>
    %cst = arith.constant 0.000000e+00 : f32
    %22 = vector.broadcast %cst : f32 to vector<32x128xf32>
    %23 = arith.maximumf %21, %22 : vector<32x128xf32>
    %c0_5 = arith.constant 0 : index
    %c0_6 = arith.constant 0 : index
    %24 = vector.load %arg4[%c0_5, %c0_6] : memref<16x32xf32, #tpu.memory_space<vmem>>, vector<16x32xf32>
    %cst_7 = arith.constant dense<0.000000e+00> : vector<16x128xf32>
    %25 = tpu.matmul %24, %23, %cst_7 {dimension_numbers = #tpu.dot_dimension_numbers<[1], [0], [0], [1], [0, 0, 1, 1], [], []>} : vector<16x32xf32>, vector<32x128xf32>, vector<16x128xf32> -> vector<16x128xf32>
    %c0_8 = arith.constant 0 : index
    %c0_9 = arith.constant 0 : index
    %26 = vector.load %arg5[%c0_8, %c0_9] : memref<16x1xf32, #tpu.memory_space<vmem>>, vector<16x1xf32>
    %27 = vector.broadcast %26 : vector<16x1xf32> to vector<16x128xf32>
    %28 = arith.addf %25, %27 : vector<16x128xf32>
    %cst_10 = arith.constant 0.000000e+00 : f32
    %29 = vector.broadcast %cst_10 : f32 to vector<16x128xf32>
    %30 = arith.maximumf %28, %29 : vector<16x128xf32>
    %c0_11 = arith.constant 0 : index
    %c0_12 = arith.constant 0 : index
    %31 = vector.load %arg6[%c0_11, %c0_12] : memref<16x1xf32, #tpu.memory_space<vmem>>, vector<16x1xf32>
    %32 = vector.broadcast %31 : vector<16x1xf32> to vector<16x128xf32>
    %33 = arith.mulf %32, %30 : vector<16x128xf32>
    %cst_13 = arith.constant dense<0.000000e+00> : vector<128xf32>
    %34 = vector.multi_reduction <add>, %33, %cst_13 [0] : vector<16x128xf32> to vector<128xf32>
    %35 = vector.shape_cast %34 : vector<128xf32> to vector<1x128xf32>
    %c0_14 = arith.constant 0 : index
    %c0_15 = arith.constant 0 : index
    %36 = vector.load %arg7[%c0_14, %c0_15] : memref<1x1xf32, #tpu.memory_space<vmem>>, vector<1x1xf32>
    %37 = vector.broadcast %36 : vector<1x1xf32> to vector<1x128xf32>
    %38 = arith.addf %35, %37 : vector<1x128xf32>
    %c0_16 = arith.constant 0 : index
    %c0_17 = arith.constant 0 : index
    %39 = vector.load %arg8[%c0_16, %c0_17] : memref<1x128xf32, #tpu.memory_space<vmem>>, vector<1x128xf32>
    tpu.vector_store %arg8[%c0_16, %c0_17], %38 {strides = array<i32>} : memref<1x128xf32, #tpu.memory_space<vmem>>, vector<1x128xf32>,
    return
  }
  func.func @transform_0(%arg0: i32) -> (i32, i32) {
    %c0_i32 = arith.constant 0 : i32
    %c0_i32_0 = arith.constant 0 : i32
    return %c0_i32, %arg0 : i32, i32
  }
  func.func @transform_1(%arg0: i32) -> (i32, i32) {
    %c0_i32 = arith.constant 0 : i32
    %c0_i32_0 = arith.constant 0 : i32
    %c0_i32_1 = arith.constant 0 : i32
    return %c0_i32, %c0_i32_0 : i32, i32
  }
  func.func @transform_2(%arg0: i32) -> (i32, i32) {
    %c0_i32 = arith.constant 0 : i32
    %c0_i32_0 = arith.constant 0 : i32
    %c0_i32_1 = arith.constant 0 : i32
    return %c0_i32, %c0_i32_0 : i32, i32
  }
  func.func @transform_3(%arg0: i32) -> (i32, i32) {
    %c0_i32 = arith.constant 0 : i32
    %c0_i32_0 = arith.constant 0 : i32
    %c0_i32_1 = arith.constant 0 : i32
    return %c0_i32, %c0_i32_0 : i32, i32
  }
  func.func @transform_4(%arg0: i32) -> (i32, i32) {
    %c0_i32 = arith.constant 0 : i32
    %c0_i32_0 = arith.constant 0 : i32
    %c0_i32_1 = arith.constant 0 : i32
    return %c0_i32, %c0_i32_0 : i32, i32
  }
  func.func @transform_5(%arg0: i32) -> (i32, i32) {
    %c0_i32 = arith.constant 0 : i32
    %c0_i32_0 = arith.constant 0 : i32
    %c0_i32_1 = arith.constant 0 : i32
    return %c0_i32, %c0_i32_0 : i32, i32
  }
  func.func @transform_6(%arg0: i32) -> (i32, i32) {
    %c0_i32 = arith.constant 0 : i32
    %c0_i32_0 = arith.constant 0 : i32
    %c0_i32_1 = arith.constant 0 : i32
    return %c0_i32, %c0_i32_0 : i32, i32
  }
  func.func @transform_7(%arg0: i32) -> (i32, i32) {
    %c0_i32 = arith.constant 0 : i32
    %c0_i32_0 = arith.constant 0 : i32
    return %c0_i32, %arg0 : i32, i32
  }
}

</mosaic_0001>

<llo_original>
// kernel: tpu_custom_call.1
$region0: #{tpu_custom_call.1}
  #allocation0 [shape = 'u32[]', space=smem, size = 0x4, offset = 0x4, fixed_abs, tag = 'smem constant byte address 0x4 - core index']
  #allocation1 [shape = 'u32[144,128]{1,0:T(1,128)}', space=vmem, size = 0x12000, scoped, tag = 'internal scratch']
  #allocation2 [shape = 'f32[1,1]{1,0:T(1,128)S(1)}', space=vmem, size = 0x200, scoped, tag = 'scoped memory for tpu_custom_call.1']
  %s0 = inlined_call_operand.vmem [shape: f32[3,128], index: 0, kind: input, shape index: {}]
  %s1 = inlined_call_operand.vmem [shape: f32[32,3], index: 1, kind: input, shape index: {}]
  %s2 = inlined_call_operand.vmem [shape: f32[32,1], index: 2, kind: input, shape index: {}]
  %s3 = inlined_call_operand.vmem [shape: f32[16,32], index: 3, kind: input, shape index: {}]
  %s4 = inlined_call_operand.vmem [shape: f32[16,1], index: 4, kind: input, shape index: {}]
  %s5 = inlined_call_operand.vmem [shape: f32[16,1], index: 5, kind: input, shape index: {}]
  %s6 = inlined_call_operand.<no memory space> [shape: f32[1,1], index: 6, kind: input, shape index: {}]
  %s7 = inlined_call_operand.hbm [shape: f32[1,128], index: 7, kind: output, shape index: {}]
  %s8 = sld [smem:[#allocation0]]
  $region38: #{tpu_custom_call.1} parent=0
    _
  %s10 = ssub.s32 1, %s8
  %s11 = scalar_select 0, %s10, %s8
  %v12 = vstv %s6
  %13 = vst [vmem:[#allocation2] sm:$0x1] %v12
  $region1: #{tpu_custom_call.1} parent=0
    #allocation3 [shape = 'u8[512]{0}', space=vmem, size = 0x400, scoped, tag = 'output window, operand 0, single buffered']
    #allocation4 [shape = 's32[1]{0}', space=sflag, size = 0x4, scoped, tag = 'scoped memory for tpu_custom_call.1']
    %14 = vsyncpa [#allocation4], 0
    // Predicated region
    $region2: #{tpu_custom_call.1} parent=1 // pred_check
      _
    $region3: #{tpu_custom_call.1} parent=1 // pred_check_branch
      %16 = sbr.rel (0) target = $region5
    $region4: #{tpu_custom_call.1} parent=1 // pred_region
      _
    $region5: #{tpu_custom_call.1} parent=1 // pred_fallthru
      _
    // Predicated region
    $region6: #{tpu_custom_call.1} parent=1 // pred_check
      _
    $region7: #{tpu_custom_call.1} parent=1 // pred_check_branch
      %18 = sbr.rel (0) target = $region9
    $region8: #{tpu_custom_call.1} parent=1 // pred_region
      _
    $region9: #{tpu_custom_call.1} parent=1 // pred_fallthru
      _
    // Predicated region
    $region10: #{tpu_custom_call.1} parent=1 // pred_check
      _
    $region11: #{tpu_custom_call.1} parent=1 // pred_check_branch
      %20 = sbr.rel (0) target = $region13
    $region12: #{tpu_custom_call.1} parent=1 // pred_region
      _
    $region13: #{tpu_custom_call.1} parent=1 // pred_fallthru
      _
    // Predicated region
    $region14: #{tpu_custom_call.1} parent=1 // pred_check
      _
    $region15: #{tpu_custom_call.1} parent=1 // pred_check_branch
      %22 = sbr.rel (0) target = $region17
    $region16: #{tpu_custom_call.1} parent=1 // pred_region
      _
    $region17: #{tpu_custom_call.1} parent=1 // pred_fallthru
      _
    // Predicated region
    $region18: #{tpu_custom_call.1} parent=1 // pred_check
      _
    $region19: #{tpu_custom_call.1} parent=1 // pred_check_branch
      %24 = sbr.rel (0) target = $region21
    $region20: #{tpu_custom_call.1} parent=1 // pred_region
      _
    $region21: #{tpu_custom_call.1} parent=1 // pred_fallthru
      _
    // Predicated region
    $region22: #{tpu_custom_call.1} parent=1 // pred_check
      _
    $region23: #{tpu_custom_call.1} parent=1 // pred_check_branch
      %26 = sbr.rel (0) target = $region25
    $region24: #{tpu_custom_call.1} parent=1 // pred_region
      _
    $region25: #{tpu_custom_call.1} parent=1 // pred_fallthru
      _
    // Predicated region
    $region26: #{tpu_custom_call.1} parent=1 // pred_check
      _
    $region27: #{tpu_custom_call.1} parent=1 // pred_check_branch
      %28 = sbr.rel (0) target = $region29
    $region28: #{tpu_custom_call.1} parent=1 // pred_region
      _
    $region29: #{tpu_custom_call.1} parent=1 // pred_fallthru
      _
    %v29 = vld [vmem:[%s0] sm:$0x7]
    %v30 = vld [vmem:[%s1] sm:$0xff]
    %v31 = vld [vmem:[%s1 + $0x8] sm:$0xff]
    %v32 = vld [vmem:[%s1 + $0x10] sm:$0xff]
    %v33 = vld [vmem:[%s1 + $0x18] sm:$0xff]
    %35 = vset.pattern.permute.xlu0 0
    %36 = vperm.xlu0 %35, %v30
    %v37 = vpop.permute.xlu0 %36
    %40 = vset.pattern.permute.xlu0 0
    %41 = vperm.xlu0 %40, %v31
    %v42 = vpop.permute.xlu0 %41
    %45 = vset.pattern.permute.xlu0 0
    %46 = vperm.xlu0 %45, %v32
    %v47 = vpop.permute.xlu0 %46
    %50 = vset.pattern.permute.xlu0 0
    %51 = vperm.xlu0 %50, %v33
    %v52 = vpop.permute.xlu0 %51
    %v54 = vlaneseq
    %v55 = vshrl.u32 %v54, 7
    %v56 = vsub.s32 0, %v55
    %v57 = vrot.slane %v29, %v56
    %v58 = vmul.f32 %v37, %v57
    %v59 = vmul.f32 %v42, %v57
    %v60 = vmul.f32 %v47, %v57
    %v61 = vmul.f32 %v52, %v57
    %62 = vset.pattern.permute.xlu0 1
    %63 = vperm.xlu0 %62, %v30
    %v64 = vpop.permute.xlu0 %63
    %66 = vset.pattern.permute.xlu0 1
    %67 = vperm.xlu0 %66, %v31
    %v68 = vpop.permute.xlu0 %67
    %70 = vset.pattern.permute.xlu0 1
    %71 = vperm.xlu0 %70, %v32
    %v72 = vpop.permute.xlu0 %71
    %74 = vset.pattern.permute.xlu0 1
    %75 = vperm.xlu0 %74, %v33
    %v76 = vpop.permute.xlu0 %75
    %v78 = vlaneseq
    %v79 = vshrl.u32 %v78, 7
    %v80 = vsub.s32 1, %v79
    %v81 = vrot.slane %v29, %v80
    %v82 = vmul.f32 %v64, %v81
    %v83 = vmul.f32 %v68, %v81
    %v84 = vmul.f32 %v72, %v81
    %v85 = vmul.f32 %v76, %v81
    %v86 = vadd.f32 %v58, %v82
    %v87 = vadd.f32 %v59, %v83
    %v88 = vadd.f32 %v60, %v84
    %v89 = vadd.f32 %v61, %v85
    %90 = vset.pattern.permute.xlu0 2
    %91 = vperm.xlu0 %90, %v30
    %v92 = vpop.permute.xlu0 %91
    %94 = vset.pattern.permute.xlu0 2
    %95 = vperm.xlu0 %94, %v31
    %v96 = vpop.permute.xlu0 %95
    %98 = vset.pattern.permute.xlu0 2
    %99 = vperm.xlu0 %98, %v32
    %v100 = vpop.permute.xlu0 %99
    %102 = vset.pattern.permute.xlu0 2
    %103 = vperm.xlu0 %102, %v33
    %v104 = vpop.permute.xlu0 %103
    %v106 = vlaneseq
    %v107 = vshrl.u32 %v106, 7
    %v108 = vsub.s32 2, %v107
    %v109 = vrot.slane %v29, %v108
    %v110 = vmul.f32 %v92, %v109
    %v111 = vmul.f32 %v96, %v109
    %v112 = vmul.f32 %v100, %v109
    %v113 = vmul.f32 %v104, %v109
    %v114 = vadd.f32 %v86, %v110
    %v115 = vadd.f32 %v87, %v111
    %v116 = vadd.f32 %v88, %v112
    %v117 = vadd.f32 %v89, %v113
    %v118 = vld [vmem:[%s2] sm:$0xff]
    %v119 = vld [vmem:[%s2 + $0x8] sm:$0xff]
    %v120 = vld [vmem:[%s2 + $0x10] sm:$0xff]
    %v121 = vld [vmem:[%s2 + $0x18] sm:$0xff]
    %123 = vset.pattern.permute.xlu0 0
    %124 = vperm.xlu0 %123, %v118
    %v125 = vpop.permute.xlu0 %124
    %128 = vset.pattern.permute.xlu0 0
    %129 = vperm.xlu0 %128, %v119
    %v130 = vpop.permute.xlu0 %129
    %133 = vset.pattern.permute.xlu0 0
    %134 = vperm.xlu0 %133, %v120
    %v135 = vpop.permute.xlu0 %134
    %138 = vset.pattern.permute.xlu0 0
    %139 = vperm.xlu0 %138, %v121
    %v140 = vpop.permute.xlu0 %139
    %v142 = vadd.f32 %v114, %v125
    %v143 = vadd.f32 %v115, %v130
    %v144 = vadd.f32 %v116, %v135
    %v145 = vadd.f32 %v117, %v140
    %v146 = vmax.f32 %v142, 0.0
    %v147 = vmax.f32 %v143, 0.0
    %v148 = vmax.f32 %v144, 0.0
    %v149 = vmax.f32 %v145, 0.0
    %v150 = vld [vmem:[%s3] sm:$0xff]
    %v151 = vld [vmem:[%s3 + $0x8] sm:$0xff]
    %v152 = vld [vmem:[%s4] sm:$0xff]
    %v153 = vld [vmem:[%s4 + $0x8] sm:$0xff]
    %155 = vset.pattern.permute.xlu0 0
    %156 = vperm.xlu0 %155, %v152
    %v157 = vpop.permute.xlu0 %156
    %160 = vset.pattern.permute.xlu0 0
    %161 = vperm.xlu0 %160, %v153
    %v162 = vpop.permute.xlu0 %161
    %vm164 = vcmask 261120
    %v166 = vsel %vm164, %v150, 0
    %v169 = vsel %vm164, %v151, 0
    %171 = vmatprep.subr.mxu0 0.0
    %172 = vmatpush1.msra.mxu0 %v146
    %173 = vmatprep.subr.mxu0 0.0
    %174 = vmatpush1.msra.mxu0 %v147
    %175 = vmatprep.subr.mxu0 0.0
    %176 = vmatpush1.msra.mxu0 %v148
    %177 = vmatprep.subr.mxu0 0.0
    %178 = vmatpush1.msra.mxu0 %v149
    %179 = vmatprep.subr.mxu0 0.0
    %180 = vmatpush1.msra.mxu0 0.0
    %181 = vmatprep.subr.mxu0 0.0
    %182 = vmatpush1.msra.mxu0 0.0
    %183 = vmatprep.subr.mxu0 0.0
    %184 = vmatpush1.msra.mxu0 0.0
    %185 = vmatprep.subr.mxu0 0.0
    %186 = vmatpush1.msra.mxu0 0.0
    %187 = vmatprep.subr.mxu0 0.0
    %188 = vmatpush1.msra.mxu0 0.0
    %189 = vmatprep.subr.mxu0 0.0
    %190 = vmatpush1.msra.mxu0 0.0
    %191 = vmatprep.subr.mxu0 0.0
    %192 = vmatpush1.msra.mxu0 0.0
    %193 = vmatprep.subr.mxu0 0.0
    %194 = vmatpush1.msra.mxu0 0.0
    %195 = vmatprep.subr.mxu0 0.0
    %196 = vmatpush1.msra.mxu0 0.0
    %197 = vmatprep.subr.mxu0 0.0
    %198 = vmatpush1.msra.mxu0 0.0
    %199 = vmatprep.subr.mxu0 0.0
    %200 = vmatpush1.msra.mxu0 0.0
    %201 = vmatprep.subr.mxu0 0.0
    %202 = vmatpush1.msra.mxu0 0.0
    %203 = vmatprep.subr.mxu0 0.0
    %204 = vmatpush1.msra.mxu0 0.0
    %205 = vmatprep.subr.mxu0 0.0
    %206 = vmatpush1.msra.mxu0 0.0
    %207 = vmatprep.subr.mxu0 0.0
    %208 = vmatpush1.msra.mxu0 0.0
    %209 = vmatprep.subr.mxu0 0.0
    %210 = vmatpush1.msra.mxu0 0.0
    %211 = vmatprep.subr.mxu0 0.0
    %212 = vmatpush1.msra.mxu0 0.0
    %213 = vmatprep.subr.mxu0 0.0
    %214 = vmatpush1.msra.mxu0 0.0
    %215 = vmatprep.subr.mxu0 0.0
    %216 = vmatpush1.msra.mxu0 0.0
    %217 = vmatprep.subr.mxu0 0.0
    %218 = vmatpush1.msra.mxu0 0.0
    %219 = vmatprep.subr.mxu0 0.0
    %220 = vmatpush1.msra.mxu0 0.0
    %221 = vmatprep.subr.mxu0 0.0
    %222 = vmatpush1.msra.mxu0 0.0
    %223 = vmatprep.subr.mxu0 0.0
    %224 = vmatpush1.msra.mxu0 0.0
    %225 = vmatprep.subr.mxu0 0.0
    %226 = vmatpush1.msra.mxu0 0.0
    %227 = vmatprep.subr.mxu0 0.0
    %228 = vmatpush1.msra.mxu0 0.0
    %229 = vmatprep.subr.mxu0 0.0
    %230 = vmatpush1.msra.mxu0 0.0
    %231 = vmatprep.subr.mxu0 0.0
    %232 = vmatpush1.msra.mxu0 0.0
    %233 = vmatprep.subr.mxu0 0.0
    %234 = vmatpush1.msra.mxu0 0.0
    %235 = vmatprep.mubr.f32.mxu0 0.0
    %236 = vmatmul.mubr.f32.gmra.mrb[0].mxu0 %v166
    %v237 = vpop.f32.mrb[0].mxu0
    %v238 = vadd.f32 %v157, %v237
    %v239 = vpop.f32.mrb[0].mxu0
    %240 = vmatprep.mubr.f32.mxu0 0.0
    %241 = vmatmul.mubr.f32.gmra.mrb[0].mxu0 %v169
    %v242 = vpop.f32.mrb[0].mxu0
    %v243 = vadd.f32 %v162, %v242
    %v244 = vpop.f32.mrb[0].mxu0
    %245 = vdwg.mxu0
    %v246 = vmax.f32 %v238, 0.0
    %v247 = vmax.f32 %v243, 0.0
    %v248 = vld [vmem:[%s5] sm:$0xff]
    %v249 = vld [vmem:[%s5 + $0x8] sm:$0xff]
    %251 = vset.pattern.permute.xlu0 0
    %252 = vperm.xlu0 %251, %v248
    %v253 = vpop.permute.xlu0 %252
    %256 = vset.pattern.permute.xlu0 0
    %257 = vperm.xlu0 %256, %v249
    %v258 = vpop.permute.xlu0 %257
    %v260 = vmul.f32 %v253, %v246
    %v261 = vmul.f32 %v258, %v247
    %v262 = vadd.f32 %v260, %v261
    %v263 = vrot.slane %v262, 4
    %v264 = vadd.f32 %v262, %v263
    %v265 = vrot.slane %v264, 2
    %v266 = vadd.f32 %v264, %v265
    %v267 = vrot.slane %v266, 1
    %v268 = vadd.f32 %v266, %v267
    %v269 = vld [vmem:[#allocation2] sm:$0x1]
    %271 = vset.pattern.permute.xlu0 0
    %272 = vperm.xlu0 %271, %v269
    %v273 = vpop.permute.xlu0 %272
    %v275 = vlaneseq
    %v276 = vshrl.u32 %v275, 7
    %v277 = vsub.s32 0, %v276
    %v278 = vrot.slane %v273, %v277
    %v279 = vadd.f32 %v268, %v278
    %280 = vst [vmem:[#allocation3] sm:$0x1] %v279
    // Predicated region
    $region30: #{tpu_custom_call.1} parent=1 // pred_check
      _
    $region31: #{tpu_custom_call.1} parent=1 // pred_check_branch
      %282 = sbr.rel (0) target = $region33
    $region32: #{tpu_custom_call.1} parent=1 // pred_region
      %s284 = ssub.s32 16, 16
      %285 = vsyncadd [#allocation4], %s284
      %s287 = sshll.u32 [#allocation3], 4
      %s288 = int_to_ptr.vmem [resolvable:$true] %s287
      %290 = dma.vmem_to_hbm [thread:$0]  %s288, 16, %s7, [#allocation4]
    $region33: #{tpu_custom_call.1} parent=1 // pred_fallthru
      _
    // Predicated region
    $region34: #{tpu_custom_call.1} parent=1 // pred_check
      _
    $region35: #{tpu_custom_call.1} parent=1 // pred_check_branch
      %292 = sbr.rel (0) target = $region37
    $region36: #{tpu_custom_call.1} parent=1 // pred_region
      %293 = dma.done [#allocation4], 16
    $region37: #{tpu_custom_call.1} parent=1 // pred_fallthru
      _
    %294 = vsyncpa [#allocation4], 1

</llo_original>
